<compile_context>
chip_gen: v6e
topology: v6e:2x2x1
jax: 0.10.0
libtpu: 0.0.40
codegen_flags: <defaults>
</compile_context>

<pallas_src>
import functools
import math

import jax
import jax.numpy as jnp
from jax.experimental import pallas as pl
from jax.experimental.pallas import tpu as pltpu


# ---------------------------------------------------------------------------
# Tile pickers
# ---------------------------------------------------------------------------
def _pick_rows_tile(total_rows, bytes_per_row, budget_bytes):
    """Largest multiple-of-8 row tile dividing total_rows under the budget.

    Falls back to the full extent when total_rows is not a multiple of 8
    (a full-extent block is always layout-legal).
    """
    if total_rows % 8 != 0:
        return total_rows
    max_rows = max(8, (budget_bytes // max(1, bytes_per_row)) // 8 * 8)
    if total_rows <= max_rows:
        return total_rows
    d = max_rows
    while d >= 8:
        if total_rows % d == 0:
            return d
        d -= 8
    return 8


def _pick_lane_tile(total_cols, bytes_per_col, budget_bytes):
    """Largest multiple-of-128 column tile dividing total_cols under budget."""
    max_cols = max(128, (budget_bytes // max(1, bytes_per_col)) // 128 * 128)
    if total_cols <= max_cols:
        return total_cols
    d = max_cols
    while d >= 128:
        if total_cols % d == 0:
            return d
        d -= 128
    return 128


# ---------------------------------------------------------------------------
# Pass 1: streaming batch-std reduction (+ fused pass-through copy)
# ---------------------------------------------------------------------------
def _batch_std_partial(x_ref, part_ref, alpha):
    """Accumulate per-column batch std-dev of the current tile into part_ref."""
    xf = x_ref[...].astype(jnp.float32)                 # (B, R, 128)
    mu = jnp.mean(xf, axis=0, keepdims=True)            # (1, R, 128)  VPU adds
    d = xf - mu
    var = jnp.mean(d * d, axis=0)                       # (R, 128)
    std = jnp.sqrt(var + jnp.float32(alpha))            # (R, 128)
    r = std.shape[0]
    if r % 8 == 0:
        # Fold sublane groups with cheap VPU adds; keep an (8,128) lane-shaped
        # partial so no cross-lane/sublane (XLU) reduce happens per step.
        partial = std.reshape(r // 8, 8, 128).sum(axis=0)          # (8, 128)
        part_ref[...] = part_ref[...] + partial[None]
    else:
        colsum = jnp.sum(std, axis=0, keepdims=True)               # (1, 128)
        part_ref[:, 0:1, :] = part_ref[:, 0:1, :] + colsum[None]


def _reduce_copy_kernel(x_ref, copy_ref, part_ref, *, alpha):
    @pl.when(pl.program_id(1) == 0)
    def _init():
        part_ref[...] = jnp.zeros_like(part_ref)

    copy_ref[...] = x_ref[...]          # fused pass-through write (input dtype)
    _batch_std_partial(x_ref, part_ref, alpha)


def _reduce_kernel(x_ref, part_ref, *, alpha):
    @pl.when(pl.program_id(1) == 0)
    def _init():
        part_ref[...] = jnp.zeros_like(part_ref)

    _batch_std_partial(x_ref, part_ref, alpha)


# ---------------------------------------------------------------------------
# Pass 2a (fast path): in-place write of only the std slab (aliased output)
# ---------------------------------------------------------------------------
def _slab_kernel(part_ref, alias_ref, o_ref, *, inv_count, pad_corr):
    del alias_ref  # aliased output buffer; pass-through region stays untouched
    s = (jnp.sum(part_ref[...]) - jnp.float32(pad_corr)) * jnp.float32(inv_count)
    o_ref[...] = jnp.broadcast_to(s, o_ref.shape).astype(o_ref.dtype)


# ---------------------------------------------------------------------------
# Pass 2b (fallback path): assemble (B, C+1, N) by copying x + filling slab
# ---------------------------------------------------------------------------
def _assemble_kernel(part_ref, x_ref, o_ref, *, inv_count, pad_corr,
                     num_channels):
    s = (jnp.sum(part_ref[...]) - jnp.float32(pad_corr)) * jnp.float32(inv_count)
    o_ref[:, :num_channels, :] = x_ref[...]
    o_ref[:, num_channels:, :] = jnp.broadcast_to(
        s, (1, 1, o_ref.shape[-1])).astype(o_ref.dtype)


# ---------------------------------------------------------------------------
# Wrapper
# ---------------------------------------------------------------------------
def minibatch_std_dev(x: jax.Array, alpha: float = 1e-8, *,
                      reduce_rows_tile: int | None = None) -> jax.Array:
    """Pallas implementation of MinibatchStdDev.forward: (B,C,H,W)->(B,C+1,H,W)."""
    B, C, H, W = x.shape
    N = H * W
    M = C * N
    itemsize = jnp.dtype(x.dtype).itemsize
    vmem_limit = 32 * 1024 * 1024     # safe on v7x (64 MiB phys) and v5e/v6e
    budget = 8 * 1024 * 1024          # soft per-step working-set budget

    fused = (N % 128 == 0)            # slab & pass-through share a lane-dense buffer

    if fused:
        pad_cols = 0
        x3 = x.reshape(B, M // 128, 128)
    else:
        # Pad the flattened feature axis to a lane multiple; padded columns are
        # all-zero so each contributes exactly sqrt(alpha) to the std sum,
        # which is subtracted again ("pad_corr") before the final mean.
        x_flat = x.reshape(B, M)
        m_pad = ((M + 127) // 128) * 128
        pad_cols = m_pad - M
        if pad_cols:
            x_flat = jnp.pad(x_flat, ((0, 0), (0, pad_cols)))
        x3 = x_flat.reshape(B, m_pad // 128, 128)

    m_rows = x3.shape[1]
    pad_corr = float(pad_cols) * math.sqrt(float(alpha))
    inv_count = 1.0 / float(M)

    # 2-way split of the reduction across TensorCores (v7x megacore); only when
    # each half keeps (8,128)-aligned row tiles.
    halves = 2 if (m_rows % 16 == 0 and m_rows >= 16) else 1
    half_rows = m_rows // halves
    bytes_per_row = B * 128 * itemsize * 4 + (B + 4) * 128 * 4
    rows_tile = (reduce_rows_tile if reduce_rows_tile is not None
                 else _pick_rows_tile(half_rows, bytes_per_row, budget))
    assert half_rows % rows_tile == 0
    assert rows_tile % 8 == 0 or rows_tile == m_rows
    t_steps = half_rows // rows_tile

    def _row_block_index(p, t):
        return (0, p * t_steps + t, 0)

    x_spec = pl.BlockSpec((B, rows_tile, 128), _row_block_index)
    part_spec = pl.BlockSpec((1, 8, 128), lambda p, t: (p, 0, 0))
    part_shape = jax.ShapeDtypeStruct((halves, 8, 128), jnp.float32)
    reduce_params = pltpu.CompilerParams(
        dimension_semantics=("parallel", "arbitrary"),
        vmem_limit_bytes=vmem_limit)

    if fused:
        out_rows = (M + N) // 128
        copy_spec = pl.BlockSpec((B, rows_tile, 128), _row_block_index)
        out_big, partials = pl.pallas_call(
            functools.partial(_reduce_copy_kernel, alpha=float(alpha)),
            out_shape=(jax.ShapeDtypeStruct((B, out_rows, 128), x.dtype),
                       part_shape),
            grid=(halves, t_steps),
            in_specs=[x_spec],
            out_specs=(copy_spec, part_spec),
            compiler_params=reduce_params,
        )(x3)

        # Pass 2: fill only the std slab, in place, via input_output_aliases.
        out2_in = out_big.reshape(B, M + N)
        slab_cols = _pick_lane_tile(N, B * (2 * itemsize + 4), budget)
        slab_steps = N // slab_cols
        col0 = M // slab_cols              # exact: slab_cols | N | M
        out2 = pl.pallas_call(
            functools.partial(_slab_kernel, inv_count=inv_count,
                              pad_corr=pad_corr),
            out_shape=jax.ShapeDtypeStruct((B, M + N), x.dtype),
            grid=(slab_steps,),
            in_specs=[
                pl.BlockSpec((halves, 8, 128), lambda i: (0, 0, 0)),
                pl.BlockSpec(memory_space=pl.ANY),   # aliased buffer, not re-read
            ],
            out_specs=pl.BlockSpec((B, slab_cols), lambda i: (0, col0 + i)),
            input_output_aliases={1: 0},
            compiler_params=pltpu.CompilerParams(
                dimension_semantics=("parallel",),
                vmem_limit_bytes=vmem_limit),
        )(partials, out2_in)
        return out2.reshape(B, C + 1, H, W)

    # ----- fallback: separate reduce + assemble (re-reads x once) -----------
    partials = pl.pallas_call(
        functools.partial(_reduce_kernel, alpha=float(alpha)),
        out_shape=part_shape,
        grid=(halves, t_steps),
        in_specs=[x_spec],
        out_specs=part_spec,
        compiler_params=reduce_params,
    )(x3)

    x3n = x.reshape(B, C, N)
    out3 = pl.pallas_call(
        functools.partial(_assemble_kernel, inv_count=inv_count,
                          pad_corr=pad_corr, num_channels=C),
        out_shape=jax.ShapeDtypeStruct((B, C + 1, N), x.dtype),
        grid=(B,),
        in_specs=[
            pl.BlockSpec((halves, 8, 128), lambda b: (0, 0, 0)),
            pl.BlockSpec((1, C, N), lambda b: (b, 0, 0)),
        ],
        out_specs=pl.BlockSpec((1, C + 1, N), lambda b: (b, 0, 0)),
        compiler_params=pltpu.CompilerParams(
            dimension_semantics=("parallel",),
            vmem_limit_bytes=vmem_limit),
    )(partials, x3n)
    return out3.reshape(B, C + 1, H, W)


# ---------------------------------------------------------------------------
# Pure-JAX reference (mirrors the PyTorch module)
# ---------------------------------------------------------------------------
def _reference(x, alpha=1e-8):
    B, _, H, W = x.shape
    xf = x.astype(jnp.float32)
    y = xf - xf.mean(axis=0, keepdims=True)
    y = jnp.sqrt(jnp.mean(y * y, axis=0) + alpha)
    s = jnp.mean(y)
    s = jnp.broadcast_to(s.astype(x.dtype), (B, 1, H, W))
    return jnp.concatenate([x, s], axis=1)


if __name__ == "__main__":
    key = jax.random.PRNGKey(0)
    B, C, H, W = 2, 4, 16, 16
    x = jax.random.normal(key, (B, C, H, W), dtype=jnp.float32)

    out = jax.block_until_ready(jax.jit(minibatch_std_dev)(x))
    ref = _reference(x)
    assert out.shape == (B, C + 1, H, W), out.shape
    assert out.dtype == x.dtype
    assert jnp.allclose(out, ref, atol=1e-5, rtol=1e-5), "mismatch (fused path)"

    # Multi-step accumulation + dual-core ("parallel") reduce split, fused slab.
    xb = jax.random.normal(jax.random.PRNGKey(1), (2, 4, 32, 32), jnp.float32)
    outb = jax.block_until_ready(
        jax.jit(functools.partial(minibatch_std_dev, reduce_rows_tile=8))(xb))
    assert jnp.allclose(outb, _reference(xb), atol=1e-5, rtol=1e-5), \
        "mismatch (tiled/split reduce path)"

    # Non-lane-aligned fallback path (H*W % 128 != 0): padded reduce + assemble.
    xc = jax.random.normal(jax.random.PRNGKey(2), (2, 3, 8, 8), jnp.float32)
    outc = jax.block_until_ready(jax.jit(minibatch_std_dev)(xc))
    assert jnp.allclose(outc, _reference(xc), atol=1e-5, rtol=1e-5), \
        "mismatch (padded fallback path)"

    print("KERNEL_OK")
</pallas_src>

<mosaic_0001>
module attributes {stable_mosaic.version = 11 : i64} {
  func.func @_reduce_copy_kernel(%arg0: i32, %arg1: i32, %arg2: memref<2x8x128xf32, #tpu.memory_space<vmem>>, %arg3: memref<2x8x128xf32, #tpu.memory_space<vmem>>, %arg4: memref<1x8x128xf32, #tpu.memory_space<vmem>>) attributes {dimension_semantics = [#tpu.dimension_semantics<parallel>, #tpu.dimension_semantics<arbitrary>], iteration_bounds = array<i64: 1, 1>, scalar_prefetch = 0 : i64, scratch_operands = 0 : i64, tpu.core_type = #tpu.core_type<tc>, window_params = [{transform_indices = @transform_0, window_bounds = array<i64: 2, 8, 128>}, {transform_indices = @transform_1, window_bounds = array<i64: 2, 8, 128>}, {transform_indices = @transform_2, window_bounds = array<i64: 1, 8, 128>}]} {
    %c0_i32 = arith.constant 0 : i32
    %0 = arith.cmpi eq, %arg1, %c0_i32 : i32
    %1 = arith.extui %0 : i1 to i32
    %c0_i32_0 = arith.constant 0 : i32
    %2 = arith.cmpi ne, %1, %c0_i32_0 : i32
    scf.if %2 {
      %cst_20 = arith.constant 0.000000e+00 : f32
      %25 = vector.broadcast %cst_20 : f32 to vector<1x8x128xf32>
      %c0_21 = arith.constant 0 : index
      %c0_22 = arith.constant 0 : index
      %c0_23 = arith.constant 0 : index
      %26 = vector.load %arg4[%c0_21, %c0_22, %c0_23] : memref<1x8x128xf32, #tpu.memory_space<vmem>>, vector<1x8x128xf32>
      tpu.vector_store %arg4[%c0_21, %c0_22, %c0_23], %25 {strides = array<i32>} : memref<1x8x128xf32, #tpu.memory_space<vmem>>, vector<1x8x128xf32>,
    } else {
    }
    %c0 = arith.constant 0 : index
    %c0_1 = arith.constant 0 : index
    %c0_2 = arith.constant 0 : index
    %3 = vector.load %arg2[%c0, %c0_1, %c0_2] : memref<2x8x128xf32, #tpu.memory_space<vmem>>, vector<2x8x128xf32>
    %c0_3 = arith.constant 0 : index
    %c0_4 = arith.constant 0 : index
    %c0_5 = arith.constant 0 : index
    %4 = vector.load %arg3[%c0_3, %c0_4, %c0_5] : memref<2x8x128xf32, #tpu.memory_space<vmem>>, vector<2x8x128xf32>
    tpu.vector_store %arg3[%c0_3, %c0_4, %c0_5], %3 {strides = array<i32>} : memref<2x8x128xf32, #tpu.memory_space<vmem>>, vector<2x8x128xf32>,
    %c0_6 = arith.constant 0 : index
    %c0_7 = arith.constant 0 : index
    %c0_8 = arith.constant 0 : index
    %5 = vector.load %arg2[%c0_6, %c0_7, %c0_8] : memref<2x8x128xf32, #tpu.memory_space<vmem>>, vector<2x8x128xf32>
    %cst = arith.constant dense<0.000000e+00> : vector<8x128xf32>
    %6 = vector.multi_reduction <add>, %5, %cst [0] : vector<2x8x128xf32> to vector<8x128xf32>
    %7 = vector.shape_cast %6 : vector<8x128xf32> to vector<1x8x128xf32>
    %cst_9 = arith.constant 2.000000e+00 : f32
    %8 = vector.broadcast %cst_9 : f32 to vector<1x8x128xf32>
    %9 = arith.divf %7, %8 : vector<1x8x128xf32>
    %10 = vector.broadcast %9 : vector<1x8x128xf32> to vector<2x8x128xf32>
    %11 = arith.subf %5, %10 : vector<2x8x128xf32>
    %12 = arith.mulf %11, %11 : vector<2x8x128xf32>
    %cst_10 = arith.constant dense<0.000000e+00> : vector<8x128xf32>
    %13 = vector.multi_reduction <add>, %12, %cst_10 [0] : vector<2x8x128xf32> to vector<8x128xf32>
    %cst_11 = arith.constant 2.000000e+00 : f32
    %14 = vector.broadcast %cst_11 : f32 to vector<8x128xf32>
    %15 = arith.divf %13, %14 : vector<8x128xf32>
    %cst_12 = arith.constant 9.99999993E-9 : f32
    %16 = vector.broadcast %cst_12 : f32 to vector<8x128xf32>
    %17 = arith.addf %15, %16 : vector<8x128xf32>
    %18 = math.sqrt %17 : vector<8x128xf32>
    %19 = vector.shape_cast %18 : vector<8x128xf32> to vector<1x8x128xf32>
    %cst_13 = arith.constant dense<0.000000e+00> : vector<8x128xf32>
    %20 = vector.multi_reduction <add>, %19, %cst_13 [0] : vector<1x8x128xf32> to vector<8x128xf32>
    %c0_14 = arith.constant 0 : index
    %c0_15 = arith.constant 0 : index
    %c0_16 = arith.constant 0 : index
    %21 = vector.load %arg4[%c0_14, %c0_15, %c0_16] : memref<1x8x128xf32, #tpu.memory_space<vmem>>, vector<1x8x128xf32>
    %22 = vector.shape_cast %20 : vector<8x128xf32> to vector<1x8x128xf32>
    %23 = arith.addf %21, %22 : vector<1x8x128xf32>
    %c0_17 = arith.constant 0 : index
    %c0_18 = arith.constant 0 : index
    %c0_19 = arith.constant 0 : index
    %24 = vector.load %arg4[%c0_17, %c0_18, %c0_19] : memref<1x8x128xf32, #tpu.memory_space<vmem>>, vector<1x8x128xf32>
    tpu.vector_store %arg4[%c0_17, %c0_18, %c0_19], %23 {strides = array<i32>} : memref<1x8x128xf32, #tpu.memory_space<vmem>>, vector<1x8x128xf32>,
    return
  }
  func.func @transform_0(%arg0: i32, %arg1: i32) -> (i32, i32, i32) {
    %c1_i32 = arith.constant 1 : i32
    %0 = arith.muli %arg0, %c1_i32 : i32
    %1 = arith.addi %0, %arg1 : i32
    %c0_i32 = arith.constant 0 : i32
    %c0_i32_0 = arith.constant 0 : i32
    %c0_i32_1 = arith.constant 0 : i32
    return %c0_i32, %1, %c0_i32_0 : i32, i32, i32
  }
  func.func @transform_1(%arg0: i32, %arg1: i32) -> (i32, i32, i32) {
    %c1_i32 = arith.constant 1 : i32
    %0 = arith.muli %arg0, %c1_i32 : i32
    %1 = arith.addi %0, %arg1 : i32
    %c0_i32 = arith.constant 0 : i32
    %c0_i32_0 = arith.constant 0 : i32
    %c0_i32_1 = arith.constant 0 : i32
    return %c0_i32, %1, %c0_i32_0 : i32, i32, i32
  }
  func.func @transform_2(%arg0: i32, %arg1: i32) -> (i32, i32, i32) {
    %c0_i32 = arith.constant 0 : i32
    %c0_i32_0 = arith.constant 0 : i32
    %c0_i32_1 = arith.constant 0 : i32
    return %arg0, %c0_i32, %c0_i32_0 : i32, i32, i32
  }
}

module attributes {stable_mosaic.version = 11 : i64} {
  func.func @_slab_kernel(%arg0: i32, %arg1: memref<1x8x128xf32, #tpu.memory_space<vmem>>, %arg2: memref<2x1280xf32, #tpu.memory_space<any>>, %arg3: memref<2x256xf32, #tpu.memory_space<vmem>>) attributes {dimension_semantics = [#tpu.dimension_semantics<parallel>], iteration_bounds = array<i64: 1>, scalar_prefetch = 0 : i64, scratch_operands = 0 : i64, tpu.core_type = #tpu.core_type<tc>, window_params = [{pipeline_mode = #tpu.pipeline_mode<synchronous>, transform_indices = @transform_0, window_bounds = array<i64: 1, 8, 128>}, {}, {transform_indices = @transform_2, window_bounds = array<i64: 2, 256>}]} {
    %c0 = arith.constant 0 : index
    %c0_0 = arith.constant 0 : index
    %c0_1 = arith.constant 0 : index
    %0 = vector.load %arg1[%c0, %c0_0, %c0_1] : memref<1x8x128xf32, #tpu.memory_space<vmem>>, vector<1x8x128xf32>
    %1 = vector.shape_cast %0 : vector<1x8x128xf32> to vector<1x1x8x128xf32>
    %cst = arith.constant dense<0.000000e+00> : vector<1xf32>
    %2 = vector.multi_reduction <add>, %1, %cst [1, 2, 3] : vector<1x1x8x128xf32> to vector<1xf32>
    %3 = vector.shape_cast %2 : vector<1xf32> to vector<1x1x1x1xf32>
    %4 = vector.extract %3[0, 0, 0, 0] : f32 from vector<1x1x1x1xf32>
    %cst_2 = arith.constant 0.000000e+00 : f32
    %5 = arith.subf %4, %cst_2 : f32
    %cst_3 = arith.constant 9.765625E-4 : f32
    %6 = arith.mulf %5, %cst_3 : f32
    %7 = vector.broadcast %6 : f32 to vector<2x256xf32>
    %c0_4 = arith.constant 0 : index
    %c0_5 = arith.constant 0 : index
    %8 = vector.load %arg3[%c0_4, %c0_5] : memref<2x256xf32, #tpu.memory_space<vmem>>, vector<2x256xf32>
    tpu.vector_store %arg3[%c0_4, %c0_5], %7 {strides = array<i32>} : memref<2x256xf32, #tpu.memory_space<vmem>>, vector<2x256xf32>,
    return
  }
  func.func @transform_0(%arg0: i32) -> (i32, i32, i32) {
    %c0_i32 = arith.constant 0 : i32
    %c0_i32_0 = arith.constant 0 : i32
    %c0_i32_1 = arith.constant 0 : i32
    %c0_i32_2 = arith.constant 0 : i32
    return %c0_i32, %c0_i32_0, %c0_i32_1 : i32, i32, i32
  }
  func.func @transform_2(%arg0: i32) -> (i32, i32) {
    %c4_i32 = arith.constant 4 : i32
    %0 = arith.addi %c4_i32, %arg0 : i32
    %c0_i32 = arith.constant 0 : i32
    %c0_i32_0 = arith.constant 0 : i32
    return %c0_i32, %0 : i32, i32
  }
}

</mosaic_0001>

<llo_original>
// kernel: minibatch_std_dev.2
$region0: #{minibatch_std_dev.2}
  #allocation0 [shape = 'u32[]', space=smem, size = 0x4, offset = 0x4, fixed_abs, tag = 'smem constant byte address 0x4 - core index']
  #allocation1 [shape = 'u32[144,128]{1,0:T(1,128)}', space=vmem, size = 0x12000, scoped, tag = 'internal scratch']
  %s0 = inlined_call_operand.vmem [shape: f32[2,8,128], index: 0, kind: input, shape index: {}]
  %s1 = inlined_call_operand.vmem [shape: f32[2,10,128], index: 1, kind: output, shape index: {0}]
  %s2 = inlined_call_operand.vmem [shape: f32[1,8,128], index: 2, kind: output, shape index: {1}]
  %3 = xla_tuple %s1, %s2
  %s4 = sld [smem:[#allocation0]]
  $region60: #{minibatch_std_dev.2} parent=0
    _
  %s6 = ssub.s32 1, %s4
  %s7 = scalar_select 0, %s6, %s4
  $region1: #{minibatch_std_dev.2} parent=0
    #allocation2 [shape = 'u8[8192]{0}', space=vmem, size = 0x2000, scoped, tag = 'output window, operand 0, single buffered']
    // Predicated region
    $region2: #{minibatch_std_dev.2} parent=1 // pred_check
      _
    $region3: #{minibatch_std_dev.2} parent=1 // pred_check_branch
      %9 = sbr.rel (0) target = $region5
    $region4: #{minibatch_std_dev.2} parent=1 // pred_region
      %s10 = sadd.s32 0, 0
      %p11 = scmp.lt.s32.totalorder %s10, 0
      %s12 = scalar_select %p11, %s10, 0
      %s13 = smul.addr %s12, 8
      %s14 = scalar_lea.vmem %s0, %s13
      %s15 = sadd.s32 0, 0
    $region5: #{minibatch_std_dev.2} parent=1 // pred_fallthru
      _
    %s16 = sadd.s32 0, 0
    %p17 = scmp.lt.s32.totalorder %s16, 0
    %s18 = scalar_select %p17, %s16, 0
    %s19 = smul.addr %s18, 8
    %s20 = scalar_lea.vmem %s0, %s19
    %s21 = sadd.s32 0, 0
    %p22 = scmp.lt.s32.totalorder %s21, 0
    %s23 = scalar_select %p22, %s21, 0
    %s24 = smul.addr %s23, 8
    %s25 = scalar_lea.vmem %s0, %s24
    %s26 = sadd.s32 0, 0
    %s27 = sadd.s32 0, 0
    %p28 = scmp.eq.s32.totalorder 0, 0
    // Predicated region
    $region6: #{minibatch_std_dev.2} parent=1 // pred_check
      %p29 = pneg %p28
    $region7: #{minibatch_std_dev.2} parent=1 // pred_check_branch
      %31 = sbr.rel (%p29) target = $region9
    $region8: #{minibatch_std_dev.2} parent=1 // pred_region
      %32 = vst [vmem:[%s2] sm:$0xff] 0.0
    $region9: #{minibatch_std_dev.2} parent=1 // pred_fallthru
      _
    %v33 = vld [vmem:[%s25] sm:$0xff]
    %v34 = vld [vmem:[%s25 + $0x8] sm:$0xff]
    %35 = vst [vmem:[#allocation2] sm:$0xff] %v33
    %36 = vst [vmem:[#allocation2 + $0x8] sm:$0xff] %v34
    %v37 = vld [vmem:[%s25] sm:$0xff]
    %v38 = vld [vmem:[%s25 + $0x8] sm:$0xff]
    %v39 = vadd.f32 %v37, %v38
    %v40 = vrcp.pop 2.0
    %v41 = vmul.f32 %v39, %v40
    %v42 = vsub.f32 %v37, %v41
    %v43 = vsub.f32 %v38, %v41
    %v44 = vmul.f32 %v42, %v42
    %v45 = vmul.f32 %v43, %v43
    %v46 = vadd.f32 %v44, %v45
    %v47 = vmul.f32 %v46, %v40
    %v48 = vadd.f32 %v47, 1e-08
    %v49 = vrsqrt.pop %v48
    %v50 = vmul.f32 %v48, %v49
    %vm51 = vcmp.eq.f32.partialorder %v48, inf
    %v52 = vsel %vm51, %v48, %v50
    %vm53 = vcmp.eq.f32.partialorder %v48, 0.0
    %v54 = vand.u32 %v48, 2147483648
    %v55 = vsel %vm53, %v54, %v52
    %v56 = vadd.f32 %v55, 0.0
    %v57 = vld [vmem:[%s2] sm:$0xff]
    %v58 = vadd.f32 %v57, %v56
    %59 = vst [vmem:[%s2] sm:$0xff] %v58
    // Predicated region
    $region10: #{minibatch_std_dev.2} parent=1 // pred_check
      _
    $region11: #{minibatch_std_dev.2} parent=1 // pred_check_branch
      %61 = sbr.rel (0) target = $region13
    $region12: #{minibatch_std_dev.2} parent=1 // pred_region
      %s62 = sadd.s32 0, 0
      %s63 = smul.addr %s62, 8
      %s64 = scalar_lea.vmem %s1, %s63
      // Predicated region
      $region14: #{minibatch_std_dev.2} parent=12 // pred_check
        _
      $region15: #{minibatch_std_dev.2} parent=12 // pred_check_branch
        %66 = sbr.rel (0) target = $region17
      $region16: #{minibatch_std_dev.2} parent=12 // pred_region
        // Predicated region
        $region18: #{minibatch_std_dev.2} parent=16 // pred_check
          _
        $region19: #{minibatch_std_dev.2} parent=16 // pred_check_branch
          %68 = sbr.rel (0) target = $region21
        $region20: #{minibatch_std_dev.2} parent=16 // pred_region
          // Predicated region
          $region33: #{minibatch_std_dev.2} parent=20 // pred_check
            _
          $region34: #{minibatch_std_dev.2} parent=20 // pred_check_branch
            %86 = sbr.rel (0) target = $region36
          $region35: #{minibatch_std_dev.2} parent=20 // pred_region
            loop: start=0, step=1, limit=1
            $region37: #{minibatch_std_dev.2} parent=35 // loop_pre_header
              _
            $region38: #{minibatch_std_dev.2} parent=35 // loop_header
              %s88 = sphi 0, %s92
              %p89 = scmp.ge.s32.totalorder %s88, 1
              %s93 = sphi [#allocation2], [#allocation2]
              %s94 = sphi %s64, %s64
            $region39: #{minibatch_std_dev.2} parent=35 // loop_header_branch
              %91 = sbr.rel (%p89) target = $region43
            $region40: #{minibatch_std_dev.2} parent=35 // loop_body
              %v95 = vld [vmem:[%s93] sm:$0xff]
              %96 = vst [vmem:[%s94] sm:$0xff] %v95
              %v97 = vld [vmem:[%s93 + $0x8] sm:$0xff]
              %98 = vst [vmem:[%s94 + $0x10] sm:$0xff] %v97
            $region41: #{minibatch_std_dev.2} parent=35 // loop_footer
              %s92 = sadd.s32 1, %s88
            $region42: #{minibatch_std_dev.2} parent=35 // loop_footer_branch
              %87 = sbr.rel target = $region38
            $region43: #{minibatch_std_dev.2} parent=35 // loop_exit
              _
          $region36: #{minibatch_std_dev.2} parent=20 // pred_fallthru
            _
          // Predicated region
          $region44: #{minibatch_std_dev.2} parent=20 // pred_check
            _
          $region45: #{minibatch_std_dev.2} parent=20 // pred_check_branch
            %100 = sbr.rel target = $region47
          $region46: #{minibatch_std_dev.2} parent=20 // pred_region
            _
          $region47: #{minibatch_std_dev.2} parent=20 // pred_fallthru
            _
        $region21: #{minibatch_std_dev.2} parent=16 // pred_fallthru
          _
        // Predicated region
        $region22: #{minibatch_std_dev.2} parent=16 // pred_check
          _
        $region23: #{minibatch_std_dev.2} parent=16 // pred_check_branch
          %70 = sbr.rel target = $region25
        $region24: #{minibatch_std_dev.2} parent=16 // pred_region
          %s72 = ssub.s32 256, 1
          loop: start=0, step=1, limit=1
          $region26: #{minibatch_std_dev.2} parent=24 // loop_pre_header
            _
          $region27: #{minibatch_std_dev.2} parent=24 // loop_header
            %s74 = sphi 0, %s78
            %p75 = scmp.ge.s32.totalorder %s74, 1
            %s79 = sphi [#allocation2], [#allocation2]
            %s80 = sphi %s64, %s64
          $region28: #{minibatch_std_dev.2} parent=24 // loop_header_branch
            %77 = sbr.rel (%p75) target = $region32
          $region29: #{minibatch_std_dev.2} parent=24 // loop_body
            %v81 = vld [vmem:[%s79] sm:%s72]
            %82 = vst [vmem:[%s80] sm:%s72] %v81
            %v83 = vld [vmem:[%s79 + $0x8] sm:%s72]
            %84 = vst [vmem:[%s80 + $0x10] sm:%s72] %v83
          $region30: #{minibatch_std_dev.2} parent=24 // loop_footer
            %s78 = sadd.s32 1, %s74
          $region31: #{minibatch_std_dev.2} parent=24 // loop_footer_branch
            %73 = sbr.rel target = $region27
          $region32: #{minibatch_std_dev.2} parent=24 // loop_exit
            _
        $region25: #{minibatch_std_dev.2} parent=16 // pred_fallthru
          _
      $region17: #{minibatch_std_dev.2} parent=12 // pred_fallthru
        _
      %101 = vnop
    $region13: #{minibatch_std_dev.2} parent=1 // pred_fallthru
      _
    // Predicated region
    $region48: #{minibatch_std_dev.2} parent=1 // pred_check
      _
    $region49: #{minibatch_std_dev.2} parent=1 // pred_check_branch
      %103 = sbr.rel (0) target = $region51
    $region50: #{minibatch_std_dev.2} parent=1 // pred_region
      _
    $region51: #{minibatch_std_dev.2} parent=1 // pred_fallthru
      _
    // Predicated region
    $region52: #{minibatch_std_dev.2} parent=1 // pred_check
      _
    $region53: #{minibatch_std_dev.2} parent=1 // pred_check_branch
      %105 = sbr.rel (0) target = $region55
    $region54: #{minibatch_std_dev.2} parent=1 // pred_region
      _
    $region55: #{minibatch_std_dev.2} parent=1 // pred_fallthru
      _
    // Predicated region
    $region56: #{minibatch_std_dev.2} parent=1 // pred_check
      _
    $region57: #{minibatch_std_dev.2} parent=1 // pred_check_branch
      %107 = sbr.rel (0) target = $region59
    $region58: #{minibatch_std_dev.2} parent=1 // pred_region
      _
    $region59: #{minibatch_std_dev.2} parent=1 // pred_fallthru
      _

// kernel: minibatch_std_dev.3
$region0: #{minibatch_std_dev.3}
  #allocation0 [shape = 'u32[]', space=smem, size = 0x4, offset = 0x4, fixed_abs, tag = 'smem constant byte address 0x4 - core index']
  #allocation1 [shape = 'u32[144,128]{1,0:T(1,128)}', space=vmem, size = 0x12000, scoped, tag = 'internal scratch']
  %s0 = inlined_call_operand.vmem [shape: f32[1,8,128], index: 0, kind: input, shape index: {}]
  %s1 = inlined_call_operand.vmem [shape: f32[2,1280], index: 1, kind: input, shape index: {}, may-alias: {1,2}]
  %s2 = inlined_call_operand.vmem [shape: f32[2,1280], index: 2, kind: output, shape index: {}, may-alias: {1,2}]
  %s3 = sld [smem:[#allocation0]]
  $region14: #{minibatch_std_dev.3} parent=0
    _
  %s5 = ssub.s32 1, %s3
  %s6 = scalar_select 0, %s5, %s3
  // Predicated region
  $region2: #{minibatch_std_dev.3} parent=0 // pred_check
    _
  $region3: #{minibatch_std_dev.3} parent=0 // pred_check_branch
    %8 = sbr.rel (0) target = $region5
  $region4: #{minibatch_std_dev.3} parent=0 // pred_region
    _
  $region5: #{minibatch_std_dev.3} parent=0 // pred_fallthru
    _
  %s9 = sadd.s32 0, 4
  %s10 = smul.u32 2, %s9
  %p11 = scmp.lt.s32.totalorder %s10, 9
  %s12 = scalar_select %p11, %s10, 9
  %s13 = smul.addr %s12, 2
  %s14 = scalar_lea.vmem %s2, %s13
  %s15 = sadd.s32 0, 4
  %s16 = smul.u32 2, %s15
  %p17 = scmp.lt.s32.totalorder %s16, 9
  %s18 = scalar_select %p17, %s16, 9
  %s19 = smul.addr %s18, 2
  %s20 = scalar_lea.vmem %s2, %s19
  %s21 = sadd.s32 0, 4
  %s22 = smul.u32 2, %s21
  %v23 = vld [vmem:[%s0] sm:$0xff]
  %24 = vadd.xlane.f32.xlu0 %v23
  %v25 = vpop.xlane.xlu0 %24
  %v26 = vrot.slane %v25, 4
  %v27 = vadd.f32 %v25, %v26
  %v28 = vrot.slane %v27, 2
  %v29 = vadd.f32 %v27, %v28
  %v30 = vrot.slane %v29, 1
  %v31 = vadd.f32 %v29, %v30
  %s32 = vtos %v31
  %s33 = smul.f32 %s32, 0.0009765625
  %v34 = vstv %s33
  %35 = vst [vmem:[%s20] sm:$0xf] %v34
  %s36 = sadd.s32 0, 4
  %s37 = smul.u32 2, %s36
  %p38 = scmp.lt.s32.totalorder %s37, 9
  %s39 = scalar_select %p38, %s37, 9
  %s40 = smul.addr %s39, 2
  %s41 = scalar_lea.vmem %s2, %s40
  // Predicated region
  $region6: #{minibatch_std_dev.3} parent=0 // pred_check
    _
  $region7: #{minibatch_std_dev.3} parent=0 // pred_check_branch
    %43 = sbr.rel (0) target = $region9
  $region8: #{minibatch_std_dev.3} parent=0 // pred_region
    %s44 = sadd.s32 0, 4
    %s45 = smul.u32 2, %s44
  $region9: #{minibatch_std_dev.3} parent=0 // pred_fallthru
    _
  // Predicated region
  $region10: #{minibatch_std_dev.3} parent=0 // pred_check
    _
  $region11: #{minibatch_std_dev.3} parent=0 // pred_check_branch
    %47 = sbr.rel (0) target = $region13
  $region12: #{minibatch_std_dev.3} parent=0 // pred_region
    %s48 = sadd.s32 0, 4
    %s49 = smul.u32 2, %s48
    %p50 = scmp.lt.s32.totalorder %s49, 9
    %s51 = scalar_select %p50, %s49, 9
    %s52 = smul.addr %s51, 2
    %s53 = scalar_lea.vmem %s2, %s52
  $region13: #{minibatch_std_dev.3} parent=0 // pred_fallthru
    _

</llo_original>
